<compile_context>
chip_gen: v7x
topology: tpu7x:2x2x1
jax: 0.10.0
libtpu: 0.0.40
codegen_flags: <defaults>
</compile_context>

<pallas_src>
import functools
import math

import jax
import jax.numpy as jnp
from jax.experimental import pallas as pl
from jax.experimental.pallas import tpu as pltpu


def _msa_kernel(x_ref, gamma_ref, beta_ref,
                wqkv_ref, bqkv_ref, wo_ref, bo_ref,
                hmask_ref, abias_ref, out_ref,
                *, num_heads, head_dim, seq, batch_tile, eps):
    E = num_heads * head_dim
    M = batch_tile * seq          # rows of the folded (batch*seq) slab
    H = num_heads

    x = x_ref[...].reshape(M, E)                          # leading-dim merge (free)

    # ---- LayerNorm over embed dim (biased variance, like nn.LayerNorm) ----
    mean = jnp.mean(x, axis=-1, keepdims=True)
    xc = x - mean
    var = jnp.mean(xc * xc, axis=-1, keepdims=True)
    xn = xc * jax.lax.rsqrt(var + eps)
    xn = xn * gamma_ref[...] + beta_ref[...]              # (M, E) f32

    # ---- fused QKV projection (q-scale pre-folded into weight/bias) ----
    qkv = jnp.dot(xn.astype(wqkv_ref.dtype), wqkv_ref[...],
                  preferred_element_type=jnp.float32) + bqkv_ref[...]   # (M, 3E)
    q = qkv[:, 0 * E:1 * E]                               # lane slices at 128-
    k = qkv[:, 1 * E:2 * E]                               # multiples: vreg-aligned
    v = qkv[:, 2 * E:3 * E]

    # ---- head separation without lane shuffles ----
    # Stack H sublane-tiled copies: row block h of the (H*M, E) slab is the
    # whole (M, E) tensor.  Masking q's copy h to head-h lanes makes
    #   s[h*M+i, c] = q_h[i] . k_h[col c]   (independent of the column block),
    # so one full-width (128,128,128) matmul produces all heads' scores.
    hmask = hmask_ref[...]                                # (H*M, E) f32, 0/1
    qbig = (jnp.concatenate([q] * H, axis=0) * hmask).astype(jnp.bfloat16)
    kbig = jnp.concatenate([k] * H, axis=0).astype(jnp.bfloat16)
    vbig = jnp.concatenate([v] * H, axis=0).astype(jnp.bfloat16)

    # scores for all (head, batch) groups at once: (H*M, H*M) = (128, 128)
    s = jax.lax.dot_general(qbig, kbig, (((1,), (1,)), ((), ())),
                            preferred_element_type=jnp.float32)
    s = s + abias_ref[...]                                # precomputed 0 / -1e30

    # ---- softmax (f32, full 128-lane rows) ----
    s = s - jnp.max(s, axis=-1, keepdims=True)
    p = jnp.exp(s)
    denom = jnp.sum(p, axis=-1, keepdims=True)            # (H*M, 1)
    p = p * (1.0 / denom)                                 # exact reciprocal (cheap)

    # Invalid columns are exactly 0 after the -1e30 mask, so the untiled v
    # (replicated along sublanes) gives the correct per-head output rows.
    obig = jnp.dot(p.astype(jnp.bfloat16), vbig,
                   preferred_element_type=jnp.float32)    # (H*M, E)

    # ---- recombine heads to (M, E) with the same lane mask (no lane moves) ----
    om = obig * hmask
    o_cat = om[0:M, :]
    for h in range(1, H):                                 # 3 aligned sublane adds
        o_cat = o_cat + om[h * M:(h + 1) * M, :]

    # ---- single depth-128 out-projection ----
    y = jnp.dot(o_cat.astype(wo_ref.dtype), wo_ref[...],
                preferred_element_type=jnp.float32) + bo_ref[...]       # (M, E)

    out_ref[...] = y.reshape(batch_tile, seq, E).astype(out_ref.dtype)


def msa_forward(x, prep, *, num_heads, batch_tile=None):
    """x: (B, S, E) float32. prep: prepared params (fused / bf16 weights).

    batch_tile: batch elements per grid step.  Default = B (fold the whole
    batch into one step — best for single-TensorCore v5e/v6e).  On v7x pass
    batch_tile = B // 2 so both TensorCores get a "parallel" grid step.
    """
    B, S, E = x.shape
    assert E % num_heads == 0
    head_dim = E // num_heads
    if batch_tile is None:
        batch_tile = B
    assert B % batch_tile == 0

    M = batch_tile * S
    R = num_heads * M          # stacked rows (head, batch, seq)

    # ---- precomputed constants (hoisted out of the kernel) ----
    # head-lane mask: row block h has ones in head-h's lanes.
    lane_head = jnp.arange(E, dtype=jnp.int32) // head_dim            # (E,)
    row_head = jnp.repeat(jnp.arange(num_heads, dtype=jnp.int32), M)  # (R,)
    head_mask = (lane_head[None, :] == row_head[:, None]).astype(jnp.float32)
    # additive softmax mask: valid iff same (head, batch) group of S rows.
    gid = jnp.arange(R, dtype=jnp.int32) // S
    attn_bias = jnp.where(gid[:, None] == gid[None, :], 0.0, -1e30
                          ).astype(jnp.float32)                        # (R, R)

    kernel = functools.partial(_msa_kernel, num_heads=num_heads,
                               head_dim=head_dim, seq=S,
                               batch_tile=batch_tile, eps=1e-5)

    def const_spec(arr):
        return pl.BlockSpec(arr.shape, lambda g: (0, 0))

    in_specs = [
        pl.BlockSpec((batch_tile, S, E), lambda g: (g, 0, 0)),  # x
        const_spec(prep["gamma"]),                              # (1, E)
        const_spec(prep["beta"]),                               # (1, E)
        const_spec(prep["wqkv"]),                               # (E, 3E) bf16
        const_spec(prep["bqkv"]),                               # (1, 3E)
        const_spec(prep["wo"]),                                 # (E, E)  bf16
        const_spec(prep["bo"]),                                 # (1, E)
        const_spec(head_mask),                                  # (R, E)
        const_spec(attn_bias),                                  # (R, R)
    ]
    out_spec = pl.BlockSpec((batch_tile, S, E), lambda g: (g, 0, 0))

    return pl.pallas_call(
        kernel,
        out_shape=jax.ShapeDtypeStruct((B, S, E), jnp.float32),
        grid_spec=pltpu.PrefetchScalarGridSpec(
            num_scalar_prefetch=0,
            grid=(B // batch_tile,),
            in_specs=in_specs,
            out_specs=out_spec,
        ),
        compiler_params=pltpu.CompilerParams(
            dimension_semantics=("parallel",)),
    )(x, prep["gamma"], prep["beta"], prep["wqkv"], prep["bqkv"],
      prep["wo"], prep["bo"], head_mask, attn_bias)


def make_params(key, embed_dim):
    """Synthetic f32 weights (projection matrices stored as x @ W layout,
    equivalent to nn.MultiheadAttention's fused in_proj + out_proj)."""
    ks = jax.random.split(key, 8)
    s = 1.0 / math.sqrt(embed_dim)
    E = embed_dim
    return {
        "gamma": jnp.ones((1, E), jnp.float32),
        "beta": jnp.zeros((1, E), jnp.float32),
        "wq": jax.random.normal(ks[0], (E, E), jnp.float32) * s,
        "wk": jax.random.normal(ks[1], (E, E), jnp.float32) * s,
        "wv": jax.random.normal(ks[2], (E, E), jnp.float32) * s,
        "bq": jax.random.normal(ks[3], (1, E), jnp.float32) * 0.02,
        "bk": jax.random.normal(ks[4], (1, E), jnp.float32) * 0.02,
        "bv": jax.random.normal(ks[5], (1, E), jnp.float32) * 0.02,
        "wo": jax.random.normal(ks[6], (E, E), jnp.float32) * s,
        "bo": jax.random.normal(ks[7], (1, E), jnp.float32) * 0.02,
    }


def prepare_params(params, *, num_heads):
    """One-time host-side prep: fuse QKV, fold 1/sqrt(Dh) into Wq/bq,
    store matmul weights in bf16 (MXU-native on v6e/v7x)."""
    E = params["wq"].shape[0]
    Dh = E // num_heads
    scale = 1.0 / math.sqrt(Dh)
    wqkv = jnp.concatenate(
        [params["wq"] * scale, params["wk"], params["wv"]], axis=1)   # (E, 3E)
    bqkv = jnp.concatenate(
        [params["bq"] * scale, params["bk"], params["bv"]], axis=1)   # (1, 3E)
    return {
        "gamma": params["gamma"],
        "beta": params["beta"],
        "wqkv": wqkv.astype(jnp.bfloat16),
        "bqkv": bqkv.astype(jnp.float32),
        "wo": params["wo"].astype(jnp.bfloat16),
        "bo": params["bo"].astype(jnp.float32),
    }


def msa_reference(x, prep, *, num_heads, eps=1e-5):
    """Pure-JAX f32 reference mirroring nn.LayerNorm + nn.MultiheadAttention
    (fused in-proj like torch; the 1/sqrt(Dh) q-scale is folded into the fused
    weight, which is algebraically identical to torch scaling q post-proj).
    Uses the same (bf16-stored) weights the kernel consumes."""
    B, S, E = x.shape
    Dh = E // num_heads
    mean = jnp.mean(x, axis=-1, keepdims=True)
    var = jnp.mean((x - mean) ** 2, axis=-1, keepdims=True)
    xn = (x - mean) / jnp.sqrt(var + eps)
    xn = xn * prep["gamma"] + prep["beta"]
    wqkv = prep["wqkv"].astype(jnp.float32)
    qkv = xn @ wqkv + prep["bqkv"]
    q, k, v = qkv[..., :E], qkv[..., E:2 * E], qkv[..., 2 * E:]
    q = q.reshape(B, S, num_heads, Dh).transpose(0, 2, 1, 3)
    k = k.reshape(B, S, num_heads, Dh).transpose(0, 2, 1, 3)
    v = v.reshape(B, S, num_heads, Dh).transpose(0, 2, 1, 3)
    s = jnp.einsum("bhqd,bhkd->bhqk", q, k)
    p = jax.nn.softmax(s, axis=-1)
    o = jnp.einsum("bhqk,bhkd->bhqd", p, v)
    o = o.transpose(0, 2, 1, 3).reshape(B, S, E)
    return o @ prep["wo"].astype(jnp.float32) + prep["bo"]


if __name__ == "__main__":
    # Small shapes consistent with the module (ViT-style MSA):
    # batch=2, seq=16, embed=128, heads=4 (head_dim=32).
    B, S, E, H = 2, 16, 128, 4
    key = jax.random.PRNGKey(0)
    k_x, k_p = jax.random.split(key)
    x = jax.random.normal(k_x, (B, S, E), jnp.float32)

    raw_params = make_params(k_p, E)
    prep = prepare_params(raw_params, num_heads=H)

    out = msa_forward(x, prep, num_heads=H)          # whole batch in 1 grid step
    out = jax.block_until_ready(out)

    ref = msa_reference(x, prep, num_heads=H)
    assert out.shape == (B, S, E)
    max_err = float(jnp.max(jnp.abs(out - ref)))
    # Tolerance accommodates bf16 matmul operands inside the kernel.
    assert jnp.allclose(out, ref, atol=5e-2, rtol=5e-2), f"mismatch: {max_err}"

    print("KERNEL_OK")
</pallas_src>

<mosaic_0001>
module attributes {stable_mosaic.version = 11 : i64} {
  func.func @_msa_kernel(%arg0: i32, %arg1: memref<2x16x128xf32, #tpu.memory_space<vmem>>, %arg2: memref<1x128xf32, #tpu.memory_space<vmem>>, %arg3: memref<1x128xf32, #tpu.memory_space<vmem>>, %arg4: memref<128x384xbf16, #tpu.memory_space<vmem>>, %arg5: memref<1x384xf32, #tpu.memory_space<vmem>>, %arg6: memref<128x128xbf16, #tpu.memory_space<vmem>>, %arg7: memref<1x128xf32, #tpu.memory_space<vmem>>, %arg8: memref<128x128xf32, #tpu.memory_space<vmem>>, %arg9: memref<128x128xf32, #tpu.memory_space<vmem>>, %arg10: memref<2x16x128xf32, #tpu.memory_space<vmem>>) attributes {dimension_semantics = [#tpu.dimension_semantics<parallel>], iteration_bounds = array<i64: 1>, scalar_prefetch = 0 : i64, scratch_operands = 0 : i64, tpu.core_type = #tpu.core_type<tc>, window_params = [{transform_indices = @transform_0, window_bounds = array<i64: 2, 16, 128>}, {pipeline_mode = #tpu.pipeline_mode<synchronous>, transform_indices = @transform_1, window_bounds = array<i64: 1, 128>}, {pipeline_mode = #tpu.pipeline_mode<synchronous>, transform_indices = @transform_2, window_bounds = array<i64: 1, 128>}, {pipeline_mode = #tpu.pipeline_mode<synchronous>, transform_indices = @transform_3, window_bounds = array<i64: 128, 384>}, {pipeline_mode = #tpu.pipeline_mode<synchronous>, transform_indices = @transform_4, window_bounds = array<i64: 1, 384>}, {pipeline_mode = #tpu.pipeline_mode<synchronous>, transform_indices = @transform_5, window_bounds = array<i64: 128, 128>}, {pipeline_mode = #tpu.pipeline_mode<synchronous>, transform_indices = @transform_6, window_bounds = array<i64: 1, 128>}, {pipeline_mode = #tpu.pipeline_mode<synchronous>, transform_indices = @transform_7, window_bounds = array<i64: 128, 128>}, {pipeline_mode = #tpu.pipeline_mode<synchronous>, transform_indices = @transform_8, window_bounds = array<i64: 128, 128>}, {transform_indices = @transform_9, window_bounds = array<i64: 2, 16, 128>}]} {
    %c0 = arith.constant 0 : index
    %c0_0 = arith.constant 0 : index
    %c0_1 = arith.constant 0 : index
    %0 = vector.load %arg1[%c0, %c0_0, %c0_1] : memref<2x16x128xf32, #tpu.memory_space<vmem>>, vector<2x16x128xf32>
    %1 = vector.shape_cast %0 : vector<2x16x128xf32> to vector<32x128xf32>
    %cst = arith.constant dense<0.000000e+00> : vector<32xf32>
    %2 = vector.multi_reduction <add>, %1, %cst [1] : vector<32x128xf32> to vector<32xf32>
    %3 = vector.shape_cast %2 : vector<32xf32> to vector<32x1xf32>
    %cst_2 = arith.constant 1.280000e+02 : f32
    %4 = vector.broadcast %cst_2 : f32 to vector<32x1xf32>
    %5 = arith.divf %3, %4 : vector<32x1xf32>
    %6 = vector.broadcast %5 : vector<32x1xf32> to vector<32x128xf32>
    %7 = arith.subf %1, %6 : vector<32x128xf32>
    %8 = arith.mulf %7, %7 : vector<32x128xf32>
    %cst_3 = arith.constant dense<0.000000e+00> : vector<32xf32>
    %9 = vector.multi_reduction <add>, %8, %cst_3 [1] : vector<32x128xf32> to vector<32xf32>
    %10 = vector.shape_cast %9 : vector<32xf32> to vector<32x1xf32>
    %cst_4 = arith.constant 1.280000e+02 : f32
    %11 = vector.broadcast %cst_4 : f32 to vector<32x1xf32>
    %12 = arith.divf %10, %11 : vector<32x1xf32>
    %cst_5 = arith.constant 9.99999974E-6 : f32
    %13 = vector.broadcast %cst_5 : f32 to vector<32x1xf32>
    %14 = arith.addf %12, %13 : vector<32x1xf32>
    %15 = math.rsqrt %14 : vector<32x1xf32>
    %16 = vector.broadcast %15 : vector<32x1xf32> to vector<32x128xf32>
    %17 = arith.mulf %7, %16 : vector<32x128xf32>
    %c0_6 = arith.constant 0 : index
    %c0_7 = arith.constant 0 : index
    %18 = vector.load %arg2[%c0_6, %c0_7] : memref<1x128xf32, #tpu.memory_space<vmem>>, vector<1x128xf32>
    %19 = vector.broadcast %18 : vector<1x128xf32> to vector<32x128xf32>
    %20 = arith.mulf %17, %19 : vector<32x128xf32>
    %c0_8 = arith.constant 0 : index
    %c0_9 = arith.constant 0 : index
    %21 = vector.load %arg3[%c0_8, %c0_9] : memref<1x128xf32, #tpu.memory_space<vmem>>, vector<1x128xf32>
    %22 = vector.broadcast %21 : vector<1x128xf32> to vector<32x128xf32>
    %23 = arith.addf %20, %22 : vector<32x128xf32>
    %24 = arith.truncf %23 : vector<32x128xf32> to vector<32x128xbf16>
    %c0_10 = arith.constant 0 : index
    %c0_11 = arith.constant 0 : index
    %25 = vector.load %arg4[%c0_10, %c0_11] : memref<128x384xbf16, #tpu.memory_space<vmem>>, vector<128x384xbf16>
    %cst_12 = arith.constant dense<0.000000e+00> : vector<32x384xf32>
    %26 = tpu.matmul %24, %25, %cst_12 {dimension_numbers = #tpu.dot_dimension_numbers<[1], [0], [0], [1], [0, 0, 1, 1], [], []>} : vector<32x128xbf16>, vector<128x384xbf16>, vector<32x384xf32> -> vector<32x384xf32>
    %c0_13 = arith.constant 0 : index
    %c0_14 = arith.constant 0 : index
    %27 = vector.load %arg5[%c0_13, %c0_14] : memref<1x384xf32, #tpu.memory_space<vmem>>, vector<1x384xf32>
    %28 = vector.broadcast %27 : vector<1x384xf32> to vector<32x384xf32>
    %29 = arith.addf %26, %28 : vector<32x384xf32>
    %30 = vector.extract_strided_slice %29 {offsets = [0, 0], sizes = [32, 128], strides = [1, 1]} : vector<32x384xf32> to vector<32x128xf32>
    %31 = vector.extract_strided_slice %29 {offsets = [0, 128], sizes = [32, 128], strides = [1, 1]} : vector<32x384xf32> to vector<32x128xf32>
    %32 = vector.extract_strided_slice %29 {offsets = [0, 256], sizes = [32, 128], strides = [1, 1]} : vector<32x384xf32> to vector<32x128xf32>
    %c0_15 = arith.constant 0 : index
    %c0_16 = arith.constant 0 : index
    %33 = vector.load %arg8[%c0_15, %c0_16] : memref<128x128xf32, #tpu.memory_space<vmem>>, vector<128x128xf32>
    %34 = tpu.concatenate %30, %30, %30, %30 in 0 : vector<32x128xf32>, vector<32x128xf32>, vector<32x128xf32>, vector<32x128xf32> -> vector<128x128xf32>
    %35 = arith.mulf %34, %33 : vector<128x128xf32>
    %36 = arith.truncf %35 : vector<128x128xf32> to vector<128x128xbf16>
    %37 = tpu.concatenate %31, %31, %31, %31 in 0 : vector<32x128xf32>, vector<32x128xf32>, vector<32x128xf32>, vector<32x128xf32> -> vector<128x128xf32>
    %38 = arith.truncf %37 : vector<128x128xf32> to vector<128x128xbf16>
    %39 = tpu.concatenate %32, %32, %32, %32 in 0 : vector<32x128xf32>, vector<32x128xf32>, vector<32x128xf32>, vector<32x128xf32> -> vector<128x128xf32>
    %40 = arith.truncf %39 : vector<128x128xf32> to vector<128x128xbf16>
    %cst_17 = arith.constant dense<0.000000e+00> : vector<128x128xf32>
    %41 = tpu.matmul %36, %38, %cst_17 {dimension_numbers = #tpu.dot_dimension_numbers<[1], [1], [0], [0], [0, 0, 1, 0], [], []>} : vector<128x128xbf16>, vector<128x128xbf16>, vector<128x128xf32> -> vector<128x128xf32>
    %c0_18 = arith.constant 0 : index
    %c0_19 = arith.constant 0 : index
    %42 = vector.load %arg9[%c0_18, %c0_19] : memref<128x128xf32, #tpu.memory_space<vmem>>, vector<128x128xf32>
    %43 = arith.addf %41, %42 : vector<128x128xf32>
    %cst_20 = arith.constant dense<0xFF800000> : vector<128xf32>
    %44 = vector.multi_reduction <maximumf>, %43, %cst_20 [1] : vector<128x128xf32> to vector<128xf32>
    %45 = vector.shape_cast %44 : vector<128xf32> to vector<128x1xf32>
    %46 = vector.broadcast %45 : vector<128x1xf32> to vector<128x128xf32>
    %47 = arith.subf %43, %46 : vector<128x128xf32>
    %48 = math.exp %47 : vector<128x128xf32>
    %cst_21 = arith.constant dense<0.000000e+00> : vector<128xf32>
    %49 = vector.multi_reduction <add>, %48, %cst_21 [1] : vector<128x128xf32> to vector<128xf32>
    %50 = vector.shape_cast %49 : vector<128xf32> to vector<128x1xf32>
    %cst_22 = arith.constant 1.000000e+00 : f32
    %51 = vector.broadcast %cst_22 : f32 to vector<128x1xf32>
    %52 = arith.divf %51, %50 : vector<128x1xf32>
    %53 = vector.broadcast %52 : vector<128x1xf32> to vector<128x128xf32>
    %54 = arith.mulf %48, %53 : vector<128x128xf32>
    %55 = arith.truncf %54 : vector<128x128xf32> to vector<128x128xbf16>
    %cst_23 = arith.constant dense<0.000000e+00> : vector<128x128xf32>
    %56 = tpu.matmul %55, %40, %cst_23 {dimension_numbers = #tpu.dot_dimension_numbers<[1], [0], [0], [1], [0, 0, 1, 1], [], []>} : vector<128x128xbf16>, vector<128x128xbf16>, vector<128x128xf32> -> vector<128x128xf32>
    %57 = arith.mulf %56, %33 : vector<128x128xf32>
    %58 = vector.extract_strided_slice %57 {offsets = [0, 0], sizes = [32, 128], strides = [1, 1]} : vector<128x128xf32> to vector<32x128xf32>
    %59 = vector.extract_strided_slice %57 {offsets = [32, 0], sizes = [32, 128], strides = [1, 1]} : vector<128x128xf32> to vector<32x128xf32>
    %60 = arith.addf %58, %59 : vector<32x128xf32>
    %61 = vector.extract_strided_slice %57 {offsets = [64, 0], sizes = [32, 128], strides = [1, 1]} : vector<128x128xf32> to vector<32x128xf32>
    %62 = arith.addf %60, %61 : vector<32x128xf32>
    %63 = vector.extract_strided_slice %57 {offsets = [96, 0], sizes = [32, 128], strides = [1, 1]} : vector<128x128xf32> to vector<32x128xf32>
    %64 = arith.addf %62, %63 : vector<32x128xf32>
    %65 = arith.truncf %64 : vector<32x128xf32> to vector<32x128xbf16>
    %c0_24 = arith.constant 0 : index
    %c0_25 = arith.constant 0 : index
    %66 = vector.load %arg6[%c0_24, %c0_25] : memref<128x128xbf16, #tpu.memory_space<vmem>>, vector<128x128xbf16>
    %cst_26 = arith.constant dense<0.000000e+00> : vector<32x128xf32>
    %67 = tpu.matmul %65, %66, %cst_26 {dimension_numbers = #tpu.dot_dimension_numbers<[1], [0], [0], [1], [0, 0, 1, 1], [], []>} : vector<32x128xbf16>, vector<128x128xbf16>, vector<32x128xf32> -> vector<32x128xf32>
    %c0_27 = arith.constant 0 : index
    %c0_28 = arith.constant 0 : index
    %68 = vector.load %arg7[%c0_27, %c0_28] : memref<1x128xf32, #tpu.memory_space<vmem>>, vector<1x128xf32>
    %69 = vector.broadcast %68 : vector<1x128xf32> to vector<32x128xf32>
    %70 = arith.addf %67, %69 : vector<32x128xf32>
    %71 = vector.shape_cast %70 : vector<32x128xf32> to vector<2x16x128xf32>
    %c0_29 = arith.constant 0 : index
    %c0_30 = arith.constant 0 : index
    %c0_31 = arith.constant 0 : index
    %72 = vector.load %arg10[%c0_29, %c0_30, %c0_31] : memref<2x16x128xf32, #tpu.memory_space<vmem>>, vector<2x16x128xf32>
    tpu.vector_store %arg10[%c0_29, %c0_30, %c0_31], %71 {strides = array<i32>} : memref<2x16x128xf32, #tpu.memory_space<vmem>>, vector<2x16x128xf32>,
    return
  }
  func.func @transform_0(%arg0: i32) -> (i32, i32, i32) {
    %c0_i32 = arith.constant 0 : i32
    %c0_i32_0 = arith.constant 0 : i32
    %c0_i32_1 = arith.constant 0 : i32
    return %arg0, %c0_i32, %c0_i32_0 : i32, i32, i32
  }
  func.func @transform_1(%arg0: i32) -> (i32, i32) {
    %c0_i32 = arith.constant 0 : i32
    %c0_i32_0 = arith.constant 0 : i32
    %c0_i32_1 = arith.constant 0 : i32
    return %c0_i32, %c0_i32_0 : i32, i32
  }
  func.func @transform_2(%arg0: i32) -> (i32, i32) {
    %c0_i32 = arith.constant 0 : i32
    %c0_i32_0 = arith.constant 0 : i32
    %c0_i32_1 = arith.constant 0 : i32
    return %c0_i32, %c0_i32_0 : i32, i32
  }
  func.func @transform_3(%arg0: i32) -> (i32, i32) {
    %c0_i32 = arith.constant 0 : i32
    %c0_i32_0 = arith.constant 0 : i32
    %c0_i32_1 = arith.constant 0 : i32
    return %c0_i32, %c0_i32_0 : i32, i32
  }
  func.func @transform_4(%arg0: i32) -> (i32, i32) {
    %c0_i32 = arith.constant 0 : i32
    %c0_i32_0 = arith.constant 0 : i32
    %c0_i32_1 = arith.constant 0 : i32
    return %c0_i32, %c0_i32_0 : i32, i32
  }
  func.func @transform_5(%arg0: i32) -> (i32, i32) {
    %c0_i32 = arith.constant 0 : i32
    %c0_i32_0 = arith.constant 0 : i32
    %c0_i32_1 = arith.constant 0 : i32
    return %c0_i32, %c0_i32_0 : i32, i32
  }
  func.func @transform_6(%arg0: i32) -> (i32, i32) {
    %c0_i32 = arith.constant 0 : i32
    %c0_i32_0 = arith.constant 0 : i32
    %c0_i32_1 = arith.constant 0 : i32
    return %c0_i32, %c0_i32_0 : i32, i32
  }
  func.func @transform_7(%arg0: i32) -> (i32, i32) {
    %c0_i32 = arith.constant 0 : i32
    %c0_i32_0 = arith.constant 0 : i32
    %c0_i32_1 = arith.constant 0 : i32
    return %c0_i32, %c0_i32_0 : i32, i32
  }
  func.func @transform_8(%arg0: i32) -> (i32, i32) {
    %c0_i32 = arith.constant 0 : i32
    %c0_i32_0 = arith.constant 0 : i32
    %c0_i32_1 = arith.constant 0 : i32
    return %c0_i32, %c0_i32_0 : i32, i32
  }
  func.func @transform_9(%arg0: i32) -> (i32, i32, i32) {
    %c0_i32 = arith.constant 0 : i32
    %c0_i32_0 = arith.constant 0 : i32
    %c0_i32_1 = arith.constant 0 : i32
    return %arg0, %c0_i32, %c0_i32_0 : i32, i32, i32
  }
}

</mosaic_0001>

<llo_original>
// kernel: tpu_custom_call.1
$region0: #{tpu_custom_call.1}
  #allocation0 [shape = 'u32[]', space=smem, size = 0x4, offset = 0x4, fixed_abs, tag = 'smem constant byte address 0x4 - core index']
  #allocation1 [shape = 'u32[144,128]{1,0:T(1,128)}', space=vmem, size = 0x12000, scoped, tag = 'internal scratch']
  %s0 = inlined_call_operand.hbm [shape: f32[2,16,128], index: 0, kind: input, shape index: {}]
  %s1 = inlined_call_operand.vmem [shape: f32[1,128], index: 1, kind: input, shape index: {}]
  %s2 = inlined_call_operand.vmem [shape: f32[1,128], index: 2, kind: input, shape index: {}]
  %s3 = inlined_call_operand.hbm [shape: bf16[128,384], index: 3, kind: input, shape index: {}]
  %s4 = inlined_call_operand.vmem [shape: f32[1,384], index: 4, kind: input, shape index: {}]
  %s5 = inlined_call_operand.hbm [shape: bf16[128,128], index: 5, kind: input, shape index: {}]
  %s6 = inlined_call_operand.vmem [shape: f32[1,128], index: 6, kind: input, shape index: {}]
  %s7 = inlined_call_operand.hbm [shape: f32[128,128], index: 7, kind: input, shape index: {}]
  %s8 = inlined_call_operand.hbm [shape: f32[128,128], index: 8, kind: input, shape index: {}]
  %s9 = inlined_call_operand.hbm [shape: f32[2,16,128], index: 9, kind: output, shape index: {}]
  %s10 = sld [smem:[#allocation0]]
  $region66: #{tpu_custom_call.1} parent=0
    _
  %s12 = ssub.s32 1, %s10
  %s13 = scalar_select 0, %s12, %s10
  $region1: #{tpu_custom_call.1} parent=0
    #allocation2 [shape = 'u8[16384]{0}', space=vmem, size = 0x4000, scoped, tag = 'input window, operand 0, single buffered']
    #allocation3 [shape = 's32[1]{0}', space=sflag, size = 0x4, scoped, tag = 'scoped memory for tpu_custom_call.1']
    #allocation4 [shape = 's32[1]{0}', space=sflag, size = 0x4, scoped, tag = 'scoped memory for tpu_custom_call.1']
    #allocation5 [shape = 'u8[98304]{0}', space=vmem, size = 0x18000, scoped, tag = 'input window, operand 3, single buffered']
    #allocation6 [shape = 's32[1]{0}', space=sflag, size = 0x4, scoped, tag = 'scoped memory for tpu_custom_call.1']
    #allocation7 [shape = 'u8[32768]{0}', space=vmem, size = 0x8000, scoped, tag = 'input window, operand 5, single buffered']
    #allocation8 [shape = 'u8[65536]{0}', space=vmem, size = 0x10000, scoped, tag = 'input window, operand 7, single buffered']
    #allocation9 [shape = 's32[1]{0}', space=sflag, size = 0x4, scoped, tag = 'scoped memory for tpu_custom_call.1']
    #allocation10 [shape = 'u8[65536]{0}', space=vmem, size = 0x10000, scoped, tag = 'input window, operand 8, single buffered']
    #allocation11 [shape = 'u8[16384]{0}', space=vmem, size = 0x4000, scoped, tag = 'output window, operand 0, single buffered']
    %14 = vsyncpa [#allocation3], 0
    %15 = vsyncpa [#allocation6], 0
    %16 = vsyncpa [#allocation9], 0
    %17 = vsyncpa [#allocation4], 0
    // Predicated region
    $region2: #{tpu_custom_call.1} parent=1 // pred_check
      _
    $region3: #{tpu_custom_call.1} parent=1 // pred_check_branch
      %19 = sbr.rel (0) target = $region5
    $region4: #{tpu_custom_call.1} parent=1 // pred_region
      %s21 = ssub.s32 512, 512
      %22 = vsyncadd [#allocation3], %s21
      %s23 = sshll.u32 [#allocation2], 4
      %s24 = int_to_ptr.vmem [resolvable:$true] %s23
      %29 = dma.hbm_to_vmem [thread:$0]  %s0, 512, %s24, [#allocation3], 128, 128, 8
    $region5: #{tpu_custom_call.1} parent=1 // pred_fallthru
      _
    // Predicated region
    $region6: #{tpu_custom_call.1} parent=1 // pred_check
      _
    $region7: #{tpu_custom_call.1} parent=1 // pred_check_branch
      %31 = sbr.rel (0) target = $region9
    $region8: #{tpu_custom_call.1} parent=1 // pred_region
      _
    $region9: #{tpu_custom_call.1} parent=1 // pred_fallthru
      _
    // Predicated region
    $region10: #{tpu_custom_call.1} parent=1 // pred_check
      _
    $region11: #{tpu_custom_call.1} parent=1 // pred_check_branch
      %33 = sbr.rel (0) target = $region13
    $region12: #{tpu_custom_call.1} parent=1 // pred_region
      _
    $region13: #{tpu_custom_call.1} parent=1 // pred_fallthru
      _
    // Predicated region
    $region14: #{tpu_custom_call.1} parent=1 // pred_check
      _
    $region15: #{tpu_custom_call.1} parent=1 // pred_check_branch
      %35 = sbr.rel (0) target = $region17
    $region16: #{tpu_custom_call.1} parent=1 // pred_region
      %s37 = ssub.s32 3072, 3072
      %38 = vsyncadd [#allocation6], %s37
      %s39 = sshll.u32 [#allocation5], 4
      %s40 = int_to_ptr.vmem [resolvable:$true] %s39
      %45 = dma.hbm_to_vmem [thread:$0]  %s3, 3072, %s40, [#allocation6], 192, 192, 12
    $region17: #{tpu_custom_call.1} parent=1 // pred_fallthru
      _
    // Predicated region
    $region18: #{tpu_custom_call.1} parent=1 // pred_check
      _
    $region19: #{tpu_custom_call.1} parent=1 // pred_check_branch
      %47 = sbr.rel (0) target = $region21
    $region20: #{tpu_custom_call.1} parent=1 // pred_region
      _
    $region21: #{tpu_custom_call.1} parent=1 // pred_fallthru
      _
    // Predicated region
    $region22: #{tpu_custom_call.1} parent=1 // pred_check
      _
    $region23: #{tpu_custom_call.1} parent=1 // pred_check_branch
      %49 = sbr.rel (0) target = $region25
    $region24: #{tpu_custom_call.1} parent=1 // pred_region
      %s51 = ssub.s32 1024, 1024
      %52 = vsyncadd [#allocation6], %s51
      %s53 = sshll.u32 [#allocation7], 4
      %s54 = int_to_ptr.vmem [resolvable:$true] %s53
      %59 = dma.hbm_to_vmem [thread:$0]  %s5, 1024, %s54, [#allocation6], 64, 64, 4
    $region25: #{tpu_custom_call.1} parent=1 // pred_fallthru
      _
    // Predicated region
    $region26: #{tpu_custom_call.1} parent=1 // pred_check
      _
    $region27: #{tpu_custom_call.1} parent=1 // pred_check_branch
      %61 = sbr.rel (0) target = $region29
    $region28: #{tpu_custom_call.1} parent=1 // pred_region
      _
    $region29: #{tpu_custom_call.1} parent=1 // pred_fallthru
      _
    // Predicated region
    $region30: #{tpu_custom_call.1} parent=1 // pred_check
      _
    $region31: #{tpu_custom_call.1} parent=1 // pred_check_branch
      %63 = sbr.rel (0) target = $region33
    $region32: #{tpu_custom_call.1} parent=1 // pred_region
      %s65 = ssub.s32 2048, 2048
      %66 = vsyncadd [#allocation9], %s65
      %s67 = sshll.u32 [#allocation8], 4
      %s68 = int_to_ptr.vmem [resolvable:$true] %s67
      %73 = dma.hbm_to_vmem [thread:$0]  %s7, 2048, %s68, [#allocation9], 128, 128, 8
    $region33: #{tpu_custom_call.1} parent=1 // pred_fallthru
      _
    // Predicated region
    $region34: #{tpu_custom_call.1} parent=1 // pred_check
      _
    $region35: #{tpu_custom_call.1} parent=1 // pred_check_branch
      %75 = sbr.rel (0) target = $region37
    $region36: #{tpu_custom_call.1} parent=1 // pred_region
      %s77 = ssub.s32 2048, 2048
      %78 = vsyncadd [#allocation9], %s77
      %s79 = sshll.u32 [#allocation10], 4
      %s80 = int_to_ptr.vmem [resolvable:$true] %s79
      %85 = dma.hbm_to_vmem [thread:$0]  %s8, 2048, %s80, [#allocation9], 128, 128, 8
    $region37: #{tpu_custom_call.1} parent=1 // pred_fallthru
      _
    // Predicated region
    $region38: #{tpu_custom_call.1} parent=1 // pred_check
      _
    $region39: #{tpu_custom_call.1} parent=1 // pred_check_branch
      %87 = sbr.rel (0) target = $region41
    $region40: #{tpu_custom_call.1} parent=1 // pred_region
      %88 = dma.done [#allocation3], 512
    $region41: #{tpu_custom_call.1} parent=1 // pred_fallthru
      _
    // Predicated region
    $region42: #{tpu_custom_call.1} parent=1 // pred_check
      _
    $region43: #{tpu_custom_call.1} parent=1 // pred_check_branch
      %90 = sbr.rel (0) target = $region45
    $region44: #{tpu_custom_call.1} parent=1 // pred_region
      %91 = dma.done [#allocation6], 3072
    $region45: #{tpu_custom_call.1} parent=1 // pred_fallthru
      _
    // Predicated region
    $region46: #{tpu_custom_call.1} parent=1 // pred_check
      _
    $region47: #{tpu_custom_call.1} parent=1 // pred_check_branch
      %93 = sbr.rel (0) target = $region49
    $region48: #{tpu_custom_call.1} parent=1 // pred_region
      %94 = dma.done [#allocation6], 1024
    $region49: #{tpu_custom_call.1} parent=1 // pred_fallthru
      _
    // Predicated region
    $region50: #{tpu_custom_call.1} parent=1 // pred_check
      _
    $region51: #{tpu_custom_call.1} parent=1 // pred_check_branch
      %96 = sbr.rel (0) target = $region53
    $region52: #{tpu_custom_call.1} parent=1 // pred_region
      %97 = dma.done [#allocation9], 2048
    $region53: #{tpu_custom_call.1} parent=1 // pred_fallthru
      _
    // Predicated region
    $region54: #{tpu_custom_call.1} parent=1 // pred_check
      _
    $region55: #{tpu_custom_call.1} parent=1 // pred_check_branch
      %99 = sbr.rel (0) target = $region57
    $region56: #{tpu_custom_call.1} parent=1 // pred_region
      %100 = dma.done [#allocation9], 2048
    $region57: #{tpu_custom_call.1} parent=1 // pred_fallthru
      _
    %v102 = vld [vmem:[#allocation2] sm:$0xff]
    %v103 = vld [vmem:[#allocation2 + $0x8] sm:$0xff]
    %v104 = vld [vmem:[#allocation2 + $0x10] sm:$0xff]
    %v105 = vld [vmem:[#allocation2 + $0x18] sm:$0xff]
    %106 = vadd.xlane.f32.xlu0 %v102
    %v107 = vpop.xlane.xlu0 %106
    %108 = vadd.xlane.f32.xlu0 %v103
    %v109 = vpop.xlane.xlu0 %108
    %110 = vadd.xlane.f32.xlu0 %v104
    %v111 = vpop.xlane.xlu0 %110
    %112 = vadd.xlane.f32.xlu0 %v105
    %v113 = vpop.xlane.xlu0 %112
    %v114 = vrcp.pop 128.0
    %v115 = vmul.f32 %v107, %v114
    %v116 = vmul.f32 %v109, %v114
    %v117 = vmul.f32 %v111, %v114
    %v118 = vmul.f32 %v113, %v114
    %v119 = vsub.f32 %v102, %v115
    %v120 = vsub.f32 %v103, %v116
    %v121 = vsub.f32 %v104, %v117
    %v122 = vsub.f32 %v105, %v118
    %v123 = vmul.f32 %v119, %v119
    %v124 = vmul.f32 %v120, %v120
    %v125 = vmul.f32 %v121, %v121
    %v126 = vmul.f32 %v122, %v122
    %127 = vadd.xlane.f32.xlu0 %v123
    %v128 = vpop.xlane.xlu0 %127
    %129 = vadd.xlane.f32.xlu0 %v124
    %v130 = vpop.xlane.xlu0 %129
    %131 = vadd.xlane.f32.xlu0 %v125
    %v132 = vpop.xlane.xlu0 %131
    %133 = vadd.xlane.f32.xlu0 %v126
    %v134 = vpop.xlane.xlu0 %133
    %v135 = vmul.f32 %v128, %v114
    %v136 = vmul.f32 %v130, %v114
    %v137 = vmul.f32 %v132, %v114
    %v138 = vmul.f32 %v134, %v114
    %v139 = vadd.f32 %v135, 1e-05
    %v140 = vadd.f32 %v136, 1e-05
    %v141 = vadd.f32 %v137, 1e-05
    %v142 = vadd.f32 %v138, 1e-05
    %v143 = vrsqrt.pop %v139
    %v144 = vrsqrt.pop %v140
    %v145 = vrsqrt.pop %v141
    %v146 = vrsqrt.pop %v142
    %v147 = vmul.f32 %v119, %v143
    %v148 = vmul.f32 %v120, %v144
    %v149 = vmul.f32 %v121, %v145
    %v150 = vmul.f32 %v122, %v146
    %v151 = vld [vmem:[%s1] sm:$0x1]
    %v153 = vlaneseq
    %v154 = vshrl.u32 %v153, 7
    %v155 = vsub.s32 0, %v154
    %v156 = vrot.slane %v151, %v155
    %v158 = vmul.f32 %v147, %v156
    %v159 = vmul.f32 %v148, %v156
    %v160 = vmul.f32 %v149, %v156
    %v161 = vmul.f32 %v150, %v156
    %v162 = vld [vmem:[%s2] sm:$0x1]
    %v164 = vlaneseq
    %v165 = vshrl.u32 %v164, 7
    %v166 = vsub.s32 0, %v165
    %v167 = vrot.slane %v162, %v166
    %v169 = vadd.f32 %v158, %v167
    %v170 = vadd.f32 %v159, %v167
    %v171 = vadd.f32 %v160, %v167
    %v172 = vadd.f32 %v161, %v167
    %v173 = vpack.c.bf16 %v170, %v169
    %v174 = vpack.c.bf16 %v172, %v171
    %v175 = vld [vmem:[#allocation5] sm:$0xff]
    %v176 = vld [vmem:[#allocation5 + $0x8] sm:$0xf]
    %v177 = vld [vmem:[#allocation5 + $0xc] sm:$0xff]
    %v178 = vld [vmem:[#allocation5 + $0x14] sm:$0xf]
    %v179 = vld [vmem:[#allocation5 + $0x18] sm:$0xff]
    %v180 = vld [vmem:[#allocation5 + $0x20] sm:$0xf]
    %v181 = vld [vmem:[#allocation5 + $0x24] sm:$0xff]
    %v182 = vld [vmem:[#allocation5 + $0x2c] sm:$0xf]
    %v183 = vld [vmem:[#allocation5 + $0x30] sm:$0xff]
    %v184 = vld [vmem:[#allocation5 + $0x38] sm:$0xf]
    %v185 = vld [vmem:[#allocation5 + $0x3c] sm:$0xff]
    %v186 = vld [vmem:[#allocation5 + $0x44] sm:$0xf]
    %v187 = vld [vmem:[#allocation5 + $0x48] sm:$0xff]
    %v188 = vld [vmem:[#allocation5 + $0x50] sm:$0xf]
    %v189 = vld [vmem:[#allocation5 + $0x54] sm:$0xff]
    %v190 = vld [vmem:[#allocation5 + $0x5c] sm:$0xf]
    %v191 = vld [vmem:[#allocation5 + $0x60] sm:$0xff]
    %v192 = vld [vmem:[#allocation5 + $0x68] sm:$0xf]
    %v193 = vld [vmem:[#allocation5 + $0x6c] sm:$0xff]
    %v194 = vld [vmem:[#allocation5 + $0x74] sm:$0xf]
    %v195 = vld [vmem:[#allocation5 + $0x78] sm:$0xff]
    %v196 = vld [vmem:[#allocation5 + $0x80] sm:$0xf]
    %v197 = vld [vmem:[#allocation5 + $0x84] sm:$0xff]
    %v198 = vld [vmem:[#allocation5 + $0x8c] sm:$0xf]
    %v199 = vld [vmem:[#allocation5 + $0x90] sm:$0xff]
    %v200 = vld [vmem:[#allocation5 + $0x98] sm:$0xf]
    %v201 = vld [vmem:[#allocation5 + $0x9c] sm:$0xff]
    %v202 = vld [vmem:[#allocation5 + $0xa4] sm:$0xf]
    %v203 = vld [vmem:[#allocation5 + $0xa8] sm:$0xff]
    %v204 = vld [vmem:[#allocation5 + $0xb0] sm:$0xf]
    %v205 = vld [vmem:[#allocation5 + $0xb4] sm:$0xff]
    %v206 = vld [vmem:[#allocation5 + $0xbc] sm:$0xf]
    %v207 = vld [vmem:[%s4] sm:$0x7]
    %v209 = vlaneseq
    %v210 = vshrl.u32 %v209, 7
    %v211 = vsub.s32 0, %v210
    %v212 = vrot.slane %v207, %v211
    %v213 = vlaneseq
    %v214 = vshrl.u32 %v213, 7
    %v215 = vsub.s32 1, %v214
    %v216 = vrot.slane %v207, %v215
    %v217 = vlaneseq
    %v218 = vshrl.u32 %v217, 7
    %v219 = vsub.s32 2, %v218
    %v220 = vrot.slane %v207, %v219
    %v256 = vunpack.c.l.b16 %v175
    %v257 = vunpack.c.h.b16 %v175
    %v258 = vunpack.c.l.b16 %v176
    %v259 = vunpack.c.l.b16 %v177
    %v260 = vunpack.c.h.b16 %v177
    %v261 = vunpack.c.l.b16 %v178
    %v262 = vunpack.c.l.b16 %v179
    %v263 = vunpack.c.h.b16 %v179
    %v264 = vunpack.c.l.b16 %v180
    %v265 = vunpack.c.l.b16 %v181
    %v266 = vunpack.c.h.b16 %v181
    %v267 = vunpack.c.l.b16 %v182
    %v268 = vunpack.c.l.b16 %v183
    %v269 = vunpack.c.h.b16 %v183
    %v270 = vunpack.c.l.b16 %v184
    %v271 = vunpack.c.l.b16 %v185
    %v272 = vunpack.c.h.b16 %v185
    %v273 = vunpack.c.l.b16 %v186
    %v274 = vunpack.c.l.b16 %v187
    %v275 = vunpack.c.h.b16 %v187
    %v276 = vunpack.c.l.b16 %v188
    %v277 = vunpack.c.l.b16 %v189
    %v278 = vunpack.c.h.b16 %v189
    %v279 = vunpack.c.l.b16 %v190
    %v280 = vunpack.c.l.b16 %v191
    %v281 = vunpack.c.h.b16 %v191
    %v282 = vunpack.c.l.b16 %v192
    %v283 = vunpack.c.l.b16 %v193
    %v284 = vunpack.c.h.b16 %v193
    %v285 = vunpack.c.l.b16 %v194
    %v286 = vunpack.c.l.b16 %v195
    %v287 = vunpack.c.h.b16 %v195
    %v288 = vunpack.c.l.b16 %v196
    %v289 = vunpack.c.l.b16 %v197
    %v290 = vunpack.c.h.b16 %v197
    %v291 = vunpack.c.l.b16 %v198
    %v292 = vunpack.c.l.b16 %v199
    %v293 = vunpack.c.h.b16 %v199
    %v294 = vunpack.c.l.b16 %v200
    %v295 = vunpack.c.l.b16 %v201
    %v296 = vunpack.c.h.b16 %v201
    %v297 = vunpack.c.l.b16 %v202
    %v298 = vunpack.c.l.b16 %v203
    %v299 = vunpack.c.h.b16 %v203
    %v300 = vunpack.c.l.b16 %v204
    %v301 = vunpack.c.l.b16 %v205
    %v302 = vunpack.c.h.b16 %v205
    %v303 = vunpack.c.l.b16 %v206
    %v304 = vpack.c.b16 %v259, %v256
    %v305 = vpack.c.b16 %v260, %v257
    %v306 = vpack.c.b16 %v261, %v258
    %v307 = vpack.c.b16 %v265, %v262
    %v308 = vpack.c.b16 %v266, %v263
    %v309 = vpack.c.b16 %v267, %v264
    %v310 = vpack.c.b16 %v271, %v268
    %v311 = vpack.c.b16 %v272, %v269
    %v312 = vpack.c.b16 %v273, %v270
    %v313 = vpack.c.b16 %v277, %v274
    %v314 = vpack.c.b16 %v278, %v275
    %v315 = vpack.c.b16 %v279, %v276
    %v316 = vpack.c.b16 %v283, %v280
    %v317 = vpack.c.b16 %v284, %v281
    %v318 = vpack.c.b16 %v285, %v282
    %v319 = vpack.c.b16 %v289, %v286
    %v320 = vpack.c.b16 %v290, %v287
    %v321 = vpack.c.b16 %v291, %v288
    %v322 = vpack.c.b16 %v295, %v292
    %v323 = vpack.c.b16 %v296, %v293
    %v324 = vpack.c.b16 %v297, %v294
    %v325 = vpack.c.b16 %v301, %v298
    %v326 = vpack.c.b16 %v302, %v299
    %v327 = vpack.c.b16 %v303, %v300
    %352 = vmatprep.subr.bf16.mxu0 %v305
    %353 = vmatpush1.bf16.msra.mxu0 %v304
    %354 = vmatprep.subr.bf16.mxu0 %v308
    %355 = vmatpush1.bf16.msra.mxu0 %v307
    %356 = vmatprep.subr.bf16.mxu0 %v311
    %357 = vmatpush1.bf16.msra.mxu0 %v310
    %358 = vmatprep.subr.bf16.mxu0 %v314
    %359 = vmatpush1.bf16.msra.mxu0 %v313
    %360 = vmatprep.subr.bf16.mxu0 %v317
    %361 = vmatpush1.bf16.msra.mxu0 %v316
    %362 = vmatprep.subr.bf16.mxu0 %v320
    %363 = vmatpush1.bf16.msra.mxu0 %v319
    %364 = vmatprep.subr.bf16.mxu0 %v323
    %365 = vmatpush1.bf16.msra.mxu0 %v322
    %366 = vmatprep.subr.bf16.mxu0 %v326
    %367 = vmatpush1.bf16.msra.mxu0 %v325
    %368 = vmatprep.subr.bf16.mxu0 0
    %369 = vmatpush1.bf16.msra.mxu0 0
    %370 = vmatprep.subr.bf16.mxu0 0
    %371 = vmatpush1.bf16.msra.mxu0 0
    %372 = vmatprep.subr.bf16.mxu0 0
    %373 = vmatpush1.bf16.msra.mxu0 0
    %374 = vmatprep.subr.bf16.mxu0 0
    %375 = vmatpush1.bf16.msra.mxu0 0
    %376 = vmatprep.subr.bf16.mxu0 0
    %377 = vmatpush1.bf16.msra.mxu0 0
    %378 = vmatprep.subr.bf16.mxu0 0
    %379 = vmatpush1.bf16.msra.mxu0 0
    %380 = vmatprep.subr.bf16.mxu0 0
    %381 = vmatpush1.bf16.msra.mxu0 0
    %382 = vmatprep.subr.bf16.mxu0 0
    %383 = vmatpush1.bf16.msra.mxu0 0
    %384 = vmatprep.mubr.bf16.mxu0 0
    %385 = vmatmul.mubr.bf16.gmra.mrb[0].mxu0 %v173
    %v386 = vpop.f32.mrb[0].mxu0
    %v387 = vadd.f32 %v212, %v386
    %v388 = vpop.f32.mrb[0].mxu0
    %v389 = vadd.f32 %v216, %v388
    %v390 = vpop.f32.mrb[0].mxu0
    %v391 = vadd.f32 %v212, %v390
    %v392 = vpop.f32.mrb[0].mxu0
    %v393 = vadd.f32 %v216, %v392
    %394 = vmatprep.mubr.bf16.mxu0 0
    %395 = vmatmul.mubr.bf16.gmra.mrb[0].mxu0 %v174
    %v396 = vpop.f32.mrb[0].mxu0
    %v397 = vadd.f32 %v212, %v396
    %v398 = vpop.f32.mrb[0].mxu0
    %v399 = vadd.f32 %v216, %v398
    %v400 = vpop.f32.mrb[0].mxu0
    %v401 = vadd.f32 %v212, %v400
    %v402 = vpop.f32.mrb[0].mxu0
    %v403 = vadd.f32 %v216, %v402
    %404 = vdwg.mxu0
    %405 = vmatprep.subr.bf16.mxu0 0
    %406 = vmatpush1.bf16.msra.mxu0 %v306
    %407 = vmatprep.subr.bf16.mxu0 0
    %408 = vmatpush1.bf16.msra.mxu0 %v309
    %409 = vmatprep.subr.bf16.mxu0 0
    %410 = vmatpush1.bf16.msra.mxu0 %v312
    %411 = vmatprep.subr.bf16.mxu0 0
    %412 = vmatpush1.bf16.msra.mxu0 %v315
    %413 = vmatprep.subr.bf16.mxu0 0
    %414 = vmatpush1.bf16.msra.mxu0 %v318
    %415 = vmatprep.subr.bf16.mxu0 0
    %416 = vmatpush1.bf16.msra.mxu0 %v321
    %417 = vmatprep.subr.bf16.mxu0 0
    %418 = vmatpush1.bf16.msra.mxu0 %v324
    %419 = vmatprep.subr.bf16.mxu0 0
    %420 = vmatpush1.bf16.msra.mxu0 %v327
    %421 = vmatprep.subr.bf16.mxu0 0
    %422 = vmatpush1.bf16.msra.mxu0 0
    %423 = vmatprep.subr.bf16.mxu0 0
    %424 = vmatpush1.bf16.msra.mxu0 0
    %425 = vmatprep.subr.bf16.mxu0 0
    %426 = vmatpush1.bf16.msra.mxu0 0
    %427 = vmatprep.subr.bf16.mxu0 0
    %428 = vmatpush1.bf16.msra.mxu0 0
    %429 = vmatprep.subr.bf16.mxu0 0
    %430 = vmatpush1.bf16.msra.mxu0 0
    %431 = vmatprep.subr.bf16.mxu0 0
    %432 = vmatpush1.bf16.msra.mxu0 0
    %433 = vmatprep.subr.bf16.mxu0 0
    %434 = vmatpush1.bf16.msra.mxu0 0
    %435 = vmatprep.subr.bf16.mxu0 0
    %436 = vmatpush1.bf16.msra.mxu0 0
    %437 = vmatprep.mubr.bf16.mxu0 0
    %438 = vmatmul.mubr.bf16.gmra.mrb[0].mxu0 %v173
    %v439 = vpop.f32.mrb[0].mxu0
    %v440 = vadd.f32 %v220, %v439
    %v441 = vpop.f32.mrb[0].mxu0
    %v442 = vpop.f32.mrb[0].mxu0
    %v443 = vadd.f32 %v220, %v442
    %v444 = vpop.f32.mrb[0].mxu0
    %445 = vmatprep.mubr.bf16.mxu0 0
    %446 = vmatmul.mubr.bf16.gmra.mrb[0].mxu0 %v174
    %v447 = vpop.f32.mrb[0].mxu0
    %v448 = vadd.f32 %v220, %v447
    %v449 = vpop.f32.mrb[0].mxu0
    %v450 = vpop.f32.mrb[0].mxu0
    %v451 = vadd.f32 %v220, %v450
    %v452 = vpop.f32.mrb[0].mxu0
    %453 = vdwg.mxu0
    %v454 = vld [vmem:[#allocation8] sm:$0xff]
    %v455 = vld [vmem:[#allocation8 + $0x8] sm:$0xff]
    %v456 = vld [vmem:[#allocation8 + $0x10] sm:$0xff]
    %v457 = vld [vmem:[#allocation8 + $0x18] sm:$0xff]
    %v458 = vld [vmem:[#allocation8 + $0x20] sm:$0xff]
    %v459 = vld [vmem:[#allocation8 + $0x28] sm:$0xff]
    %v460 = vld [vmem:[#allocation8 + $0x30] sm:$0xff]
    %v461 = vld [vmem:[#allocation8 + $0x38] sm:$0xff]
    %v462 = vld [vmem:[#allocation8 + $0x40] sm:$0xff]
    %v463 = vld [vmem:[#allocation8 + $0x48] sm:$0xff]
    %v464 = vld [vmem:[#allocation8 + $0x50] sm:$0xff]
    %v465 = vld [vmem:[#allocation8 + $0x58] sm:$0xff]
    %v466 = vld [vmem:[#allocation8 + $0x60] sm:$0xff]
    %v467 = vld [vmem:[#allocation8 + $0x68] sm:$0xff]
    %v468 = vld [vmem:[#allocation8 + $0x70] sm:$0xff]
    %v469 = vld [vmem:[#allocation8 + $0x78] sm:$0xff]
    %v470 = vmul.f32 %v387, %v454
    %v471 = vmul.f32 %v391, %v455
    %v472 = vmul.f32 %v397, %v456
    %v473 = vmul.f32 %v401, %v457
    %v474 = vmul.f32 %v387, %v458
    %v475 = vmul.f32 %v391, %v459
    %v476 = vmul.f32 %v397, %v460
    %v477 = vmul.f32 %v401, %v461
    %v478 = vmul.f32 %v387, %v462
    %v479 = vmul.f32 %v391, %v463
    %v480 = vmul.f32 %v397, %v464
    %v481 = vmul.f32 %v401, %v465
    %v482 = vmul.f32 %v387, %v466
    %v483 = vmul.f32 %v391, %v467
    %v484 = vmul.f32 %v397, %v468
    %v485 = vmul.f32 %v401, %v469
    %v486 = vpack.c.bf16 %v471, %v470
    %v487 = vpack.c.bf16 %v473, %v472
    %v488 = vpack.c.bf16 %v475, %v474
    %v489 = vpack.c.bf16 %v477, %v476
    %v490 = vpack.c.bf16 %v479, %v478
    %v491 = vpack.c.bf16 %v481, %v480
    %v492 = vpack.c.bf16 %v483, %v482
    %v493 = vpack.c.bf16 %v485, %v484
    %v494 = vpack.c.bf16 %v393, %v389
    %v495 = vpack.c.bf16 %v403, %v399
    %v496 = vpack.c.bf16 %v443, %v440
    %v497 = vpack.c.bf16 %v451, %v448
    %v498 = vld [vmem:[#allocation10] sm:$0xff]
    %v499 = vld [vmem:[#allocation10 + $0x8] sm:$0xff]
    %v500 = vld [vmem:[#allocation10 + $0x10] sm:$0xff]
    %v501 = vld [vmem:[#allocation10 + $0x18] sm:$0xff]
    %v502 = vld [vmem:[#allocation10 + $0x20] sm:$0xff]
    %v503 = vld [vmem:[#allocation10 + $0x28] sm:$0xff]
    %v504 = vld [vmem:[#allocation10 + $0x30] sm:$0xff]
    %v505 = vld [vmem:[#allocation10 + $0x38] sm:$0xff]
    %v506 = vld [vmem:[#allocation10 + $0x40] sm:$0xff]
    %v507 = vld [vmem:[#allocation10 + $0x48] sm:$0xff]
    %v508 = vld [vmem:[#allocation10 + $0x50] sm:$0xff]
    %v509 = vld [vmem:[#allocation10 + $0x58] sm:$0xff]
    %v510 = vld [vmem:[#allocation10 + $0x60] sm:$0xff]
    %v511 = vld [vmem:[#allocation10 + $0x68] sm:$0xff]
    %v512 = vld [vmem:[#allocation10 + $0x70] sm:$0xff]
    %v513 = vld [vmem:[#allocation10 + $0x78] sm:$0xff]
    %514 = vmatprep.subr.bf16.mxu0 0
    %515 = vmatpush1.bf16.xpose.msra.mxu0 %v494
    %516 = vmatprep.subr.bf16.mxu0 0
    %517 = vmatpush1.bf16.xpose.msra.mxu0 %v495
    %518 = vmatprep.subr.bf16.mxu0 0
    %519 = vmatpush1.bf16.xpose.msra.mxu0 %v494
    %520 = vmatprep.subr.bf16.mxu0 0
    %521 = vmatpush1.bf16.xpose.msra.mxu0 %v495
    %522 = vmatprep.subr.bf16.mxu0 0
    %523 = vmatpush1.bf16.xpose.msra.mxu0 %v494
    %524 = vmatprep.subr.bf16.mxu0 0
    %525 = vmatpush1.bf16.xpose.msra.mxu0 %v495
    %526 = vmatprep.subr.bf16.mxu0 0
    %527 = vmatpush1.bf16.xpose.msra.mxu0 %v494
    %528 = vmatprep.subr.bf16.mxu0 0
    %529 = vmatpush1.bf16.xpose.msra.mxu0 %v495
    %530 = vmatprep.subr.bf16.mxu0 0
    %531 = vmatpush1.bf16.xpose.msra.mxu0 0
    %532 = vmatprep.subr.bf16.mxu0 0
    %533 = vmatpush1.bf16.xpose.msra.mxu0 0
    %534 = vmatprep.subr.bf16.mxu0 0
    %535 = vmatpush1.bf16.xpose.msra.mxu0 0
    %536 = vmatprep.subr.bf16.mxu0 0
    %537 = vmatpush1.bf16.xpose.msra.mxu0 0
    %538 = vmatprep.subr.bf16.mxu0 0
    %539 = vmatpush1.bf16.xpose.msra.mxu0 0
    %540 = vmatprep.subr.bf16.mxu0 0
    %541 = vmatpush1.bf16.xpose.msra.mxu0 0
    %542 = vmatprep.subr.bf16.mxu0 0
    %543 = vmatpush1.bf16.xpose.msra.mxu0 0
    %544 = vmatprep.subr.bf16.mxu0 0
    %545 = vmatpush1.bf16.xpose.msra.mxu0 0
    %546 = vmatprep.mubr.bf16.mxu0 0
    %547 = vmatmul.mubr.bf16.gmra.mrb[0].mxu0 %v486
    %v548 = vpop.f32.mrb[0].mxu0
    %v549 = vadd.f32 %v498, %v548
    %v550 = vpop.f32.mrb[0].mxu0
    %v551 = vpop.f32.mrb[0].mxu0
    %v552 = vadd.f32 %v499, %v551
    %v553 = vpop.f32.mrb[0].mxu0
    %554 = vmatprep.mubr.bf16.mxu0 0
    %555 = vmatmul.mubr.bf16.gmra.mrb[0].mxu0 %v487
    %v556 = vpop.f32.mrb[0].mxu0
    %v557 = vadd.f32 %v500, %v556
    %v558 = vpop.f32.mrb[0].mxu0
    %v559 = vpop.f32.mrb[0].mxu0
    %v560 = vadd.f32 %v501, %v559
    %v561 = vpop.f32.mrb[0].mxu0
    %562 = vmatprep.mubr.bf16.mxu0 0
    %563 = vmatmul.mubr.bf16.gmra.mrb[0].mxu0 %v488
    %v564 = vpop.f32.mrb[0].mxu0
    %v565 = vadd.f32 %v502, %v564
    %v566 = vpop.f32.mrb[0].mxu0
    %v567 = vpop.f32.mrb[0].mxu0
    %v568 = vadd.f32 %v503, %v567
    %v569 = vpop.f32.mrb[0].mxu0
    %570 = vmatprep.mubr.bf16.mxu0 0
    %571 = vmatmul.mubr.bf16.gmra.mrb[0].mxu0 %v489
    %v572 = vpop.f32.mrb[0].mxu0
    %v573 = vadd.f32 %v504, %v572
    %v574 = vpop.f32.mrb[0].mxu0
    %v575 = vpop.f32.mrb[0].mxu0
    %v576 = vadd.f32 %v505, %v575
    %v577 = vpop.f32.mrb[0].mxu0
    %578 = vmatprep.mubr.bf16.mxu0 0
    %579 = vmatmul.mubr.bf16.gmra.mrb[0].mxu0 %v490
    %v580 = vpop.f32.mrb[0].mxu0
    %v581 = vadd.f32 %v506, %v580
    %v582 = vpop.f32.mrb[0].mxu0
    %v583 = vpop.f32.mrb[0].mxu0
    %v584 = vadd.f32 %v507, %v583
    %v585 = vpop.f32.mrb[0].mxu0
    %586 = vmatprep.mubr.bf16.mxu0 0
    %587 = vmatmul.mubr.bf16.gmra.mrb[0].mxu0 %v491
    %v588 = vpop.f32.mrb[0].mxu0
    %v589 = vadd.f32 %v508, %v588
    %v590 = vpop.f32.mrb[0].mxu0
    %v591 = vpop.f32.mrb[0].mxu0
    %v592 = vadd.f32 %v509, %v591
    %v593 = vpop.f32.mrb[0].mxu0
    %594 = vmatprep.mubr.bf16.mxu0 0
    %595 = vmatmul.mubr.bf16.gmra.mrb[0].mxu0 %v492
    %v596 = vpop.f32.mrb[0].mxu0
    %v597 = vadd.f32 %v510, %v596
    %v598 = vpop.f32.mrb[0].mxu0
    %v599 = vpop.f32.mrb[0].mxu0
    %v600 = vadd.f32 %v511, %v599
    %v601 = vpop.f32.mrb[0].mxu0
    %602 = vmatprep.mubr.bf16.mxu0 0
    %603 = vmatmul.mubr.bf16.gmra.mrb[0].mxu0 %v493
    %v604 = vpop.f32.mrb[0].mxu0
    %v605 = vadd.f32 %v512, %v604
    %v606 = vpop.f32.mrb[0].mxu0
    %v607 = vpop.f32.mrb[0].mxu0
    %v608 = vadd.f32 %v513, %v607
    %v609 = vpop.f32.mrb[0].mxu0
    %610 = vdwg.mxu0
    %611 = vmax.xlane.f32.xlu0 %v549
    %v612 = vpop.xlane.xlu0 %611
    %613 = vmax.xlane.f32.xlu0 %v552
    %v614 = vpop.xlane.xlu0 %613
    %615 = vmax.xlane.f32.xlu0 %v557
    %v616 = vpop.xlane.xlu0 %615
    %617 = vmax.xlane.f32.xlu0 %v560
    %v618 = vpop.xlane.xlu0 %617
    %619 = vmax.xlane.f32.xlu0 %v565
    %v620 = vpop.xlane.xlu0 %619
    %621 = vmax.xlane.f32.xlu0 %v568
    %v622 = vpop.xlane.xlu0 %621
    %623 = vmax.xlane.f32.xlu0 %v573
    %v624 = vpop.xlane.xlu0 %623
    %625 = vmax.xlane.f32.xlu0 %v576
    %v626 = vpop.xlane.xlu0 %625
    %627 = vmax.xlane.f32.xlu0 %v581
    %v628 = vpop.xlane.xlu0 %627
    %629 = vmax.xlane.f32.xlu0 %v584
    %v630 = vpop.xlane.xlu0 %629
    %631 = vmax.xlane.f32.xlu0 %v589
    %v632 = vpop.xlane.xlu0 %631
    %633 = vmax.xlane.f32.xlu0 %v592
    %v634 = vpop.xlane.xlu0 %633
    %635 = vmax.xlane.f32.xlu0 %v597
    %v636 = vpop.xlane.xlu0 %635
    %637 = vmax.xlane.f32.xlu0 %v600
    %v638 = vpop.xlane.xlu0 %637
    %639 = vmax.xlane.f32.xlu0 %v605
    %v640 = vpop.xlane.xlu0 %639
    %641 = vmax.xlane.f32.xlu0 %v608
    %v642 = vpop.xlane.xlu0 %641
    %v643 = vsub.f32 %v549, %v612
    %v644 = vsub.f32 %v552, %v614
    %v645 = vsub.f32 %v557, %v616
    %v646 = vsub.f32 %v560, %v618
    %v647 = vsub.f32 %v565, %v620
    %v648 = vsub.f32 %v568, %v622
    %v649 = vsub.f32 %v573, %v624
    %v650 = vsub.f32 %v576, %v626
    %v651 = vsub.f32 %v581, %v628
    %v652 = vsub.f32 %v584, %v630
    %v653 = vsub.f32 %v589, %v632
    %v654 = vsub.f32 %v592, %v634
    %v655 = vsub.f32 %v597, %v636
    %v656 = vsub.f32 %v600, %v638
    %v657 = vsub.f32 %v605, %v640
    %v658 = vsub.f32 %v608, %v642
    %v659 = vmul.f32 %v643, 1.442695
    %v660 = vpow.pop %v659
    %v661 = vmul.f32 %v644, 1.442695
    %v662 = vpow.pop %v661
    %v663 = vmul.f32 %v645, 1.442695
    %v664 = vpow.pop %v663
    %v665 = vmul.f32 %v646, 1.442695
    %v666 = vpow.pop %v665
    %v667 = vmul.f32 %v647, 1.442695
    %v668 = vpow.pop %v667
    %v669 = vmul.f32 %v648, 1.442695
    %v670 = vpow.pop %v669
    %v671 = vmul.f32 %v649, 1.442695
    %v672 = vpow.pop %v671
    %v673 = vmul.f32 %v650, 1.442695
    %v674 = vpow.pop %v673
    %v675 = vmul.f32 %v651, 1.442695
    %v676 = vpow.pop %v675
    %v677 = vmul.f32 %v652, 1.442695
    %v678 = vpow.pop %v677
    %v679 = vmul.f32 %v653, 1.442695
    %v680 = vpow.pop %v679
    %v681 = vmul.f32 %v654, 1.442695
    %v682 = vpow.pop %v681
    %v683 = vmul.f32 %v655, 1.442695
    %v684 = vpow.pop %v683
    %v685 = vmul.f32 %v656, 1.442695
    %v686 = vpow.pop %v685
    %v687 = vmul.f32 %v657, 1.442695
    %v688 = vpow.pop %v687
    %v689 = vmul.f32 %v658, 1.442695
    %v690 = vpow.pop %v689
    %691 = vadd.xlane.f32.xlu0 %v660
    %v692 = vpop.xlane.xlu0 %691
    %693 = vadd.xlane.f32.xlu0 %v662
    %v694 = vpop.xlane.xlu0 %693
    %695 = vadd.xlane.f32.xlu0 %v664
    %v696 = vpop.xlane.xlu0 %695
    %697 = vadd.xlane.f32.xlu0 %v666
    %v698 = vpop.xlane.xlu0 %697
    %699 = vadd.xlane.f32.xlu0 %v668
    %v700 = vpop.xlane.xlu0 %699
    %701 = vadd.xlane.f32.xlu0 %v670
    %v702 = vpop.xlane.xlu0 %701
    %703 = vadd.xlane.f32.xlu0 %v672
    %v704 = vpop.xlane.xlu0 %703
    %705 = vadd.xlane.f32.xlu0 %v674
    %v706 = vpop.xlane.xlu0 %705
    %707 = vadd.xlane.f32.xlu0 %v676
    %v708 = vpop.xlane.xlu0 %707
    %709 = vadd.xlane.f32.xlu0 %v678
    %v710 = vpop.xlane.xlu0 %709
    %711 = vadd.xlane.f32.xlu0 %v680
    %v712 = vpop.xlane.xlu0 %711
    %713 = vadd.xlane.f32.xlu0 %v682
    %v714 = vpop.xlane.xlu0 %713
    %715 = vadd.xlane.f32.xlu0 %v684
    %v716 = vpop.xlane.xlu0 %715
    %717 = vadd.xlane.f32.xlu0 %v686
    %v718 = vpop.xlane.xlu0 %717
    %719 = vadd.xlane.f32.xlu0 %v688
    %v720 = vpop.xlane.xlu0 %719
    %721 = vadd.xlane.f32.xlu0 %v690
    %v722 = vpop.xlane.xlu0 %721
    %v723 = vrcp.pop %v692
    %v724 = vmul.f32 1.0, %v723
    %v725 = vrcp.pop %v694
    %v726 = vmul.f32 1.0, %v725
    %v727 = vrcp.pop %v696
    %v728 = vmul.f32 1.0, %v727
    %v729 = vrcp.pop %v698
    %v730 = vmul.f32 1.0, %v729
    %v731 = vrcp.pop %v700
    %v732 = vmul.f32 1.0, %v731
    %v733 = vrcp.pop %v702
    %v734 = vmul.f32 1.0, %v733
    %v735 = vrcp.pop %v704
    %v736 = vmul.f32 1.0, %v735
    %v737 = vrcp.pop %v706
    %v738 = vmul.f32 1.0, %v737
    %v739 = vrcp.pop %v708
    %v740 = vmul.f32 1.0, %v739
    %v741 = vrcp.pop %v710
    %v742 = vmul.f32 1.0, %v741
    %v743 = vrcp.pop %v712
    %v744 = vmul.f32 1.0, %v743
    %v745 = vrcp.pop %v714
    %v746 = vmul.f32 1.0, %v745
    %v747 = vrcp.pop %v716
    %v748 = vmul.f32 1.0, %v747
    %v749 = vrcp.pop %v718
    %v750 = vmul.f32 1.0, %v749
    %v751 = vrcp.pop %v720
    %v752 = vmul.f32 1.0, %v751
    %v753 = vrcp.pop %v722
    %v754 = vmul.f32 1.0, %v753
    %v755 = vmul.f32 %v660, %v724
    %v756 = vmul.f32 %v662, %v726
    %v757 = vmul.f32 %v664, %v728
    %v758 = vmul.f32 %v666, %v730
    %v759 = vmul.f32 %v668, %v732
    %v760 = vmul.f32 %v670, %v734
    %v761 = vmul.f32 %v672, %v736
    %v762 = vmul.f32 %v674, %v738
    %v763 = vmul.f32 %v676, %v740
    %v764 = vmul.f32 %v678, %v742
    %v765 = vmul.f32 %v680, %v744
    %v766 = vmul.f32 %v682, %v746
    %v767 = vmul.f32 %v684, %v748
    %v768 = vmul.f32 %v686, %v750
    %v769 = vmul.f32 %v688, %v752
    %v770 = vmul.f32 %v690, %v754
    %v771 = vpack.c.bf16 %v756, %v755
    %v772 = vpack.c.bf16 %v758, %v757
    %v773 = vpack.c.bf16 %v760, %v759
    %v774 = vpack.c.bf16 %v762, %v761
    %v775 = vpack.c.bf16 %v764, %v763
    %v776 = vpack.c.bf16 %v766, %v765
    %v777 = vpack.c.bf16 %v768, %v767
    %v778 = vpack.c.bf16 %v770, %v769
    %779 = vmatprep.subr.bf16.mxu0 0
    %780 = vmatpush1.bf16.msra.mxu0 %v496
    %781 = vmatprep.subr.bf16.mxu0 0
    %782 = vmatpush1.bf16.msra.mxu0 %v497
    %783 = vmatprep.subr.bf16.mxu0 0
    %784 = vmatpush1.bf16.msra.mxu0 %v496
    %785 = vmatprep.subr.bf16.mxu0 0
    %786 = vmatpush1.bf16.msra.mxu0 %v497
    %787 = vmatprep.subr.bf16.mxu0 0
    %788 = vmatpush1.bf16.msra.mxu0 %v496
    %789 = vmatprep.subr.bf16.mxu0 0
    %790 = vmatpush1.bf16.msra.mxu0 %v497
    %791 = vmatprep.subr.bf16.mxu0 0
    %792 = vmatpush1.bf16.msra.mxu0 %v496
    %793 = vmatprep.subr.bf16.mxu0 0
    %794 = vmatpush1.bf16.msra.mxu0 %v497
    %795 = vmatprep.subr.bf16.mxu0 0
    %796 = vmatpush1.bf16.msra.mxu0 0
    %797 = vmatprep.subr.bf16.mxu0 0
    %798 = vmatpush1.bf16.msra.mxu0 0
    %799 = vmatprep.subr.bf16.mxu0 0
    %800 = vmatpush1.bf16.msra.mxu0 0
    %801 = vmatprep.subr.bf16.mxu0 0
    %802 = vmatpush1.bf16.msra.mxu0 0
    %803 = vmatprep.subr.bf16.mxu0 0
    %804 = vmatpush1.bf16.msra.mxu0 0
    %805 = vmatprep.subr.bf16.mxu0 0
    %806 = vmatpush1.bf16.msra.mxu0 0
    %807 = vmatprep.subr.bf16.mxu0 0
    %808 = vmatpush1.bf16.msra.mxu0 0
    %809 = vmatprep.subr.bf16.mxu0 0
    %810 = vmatpush1.bf16.msra.mxu0 0
    %811 = vmatprep.mubr.bf16.mxu0 0
    %812 = vmatmul.mubr.bf16.gmra.mrb[0].mxu0 %v771
    %v813 = vpop.f32.mrb[0].mxu0
    %v814 = vadd.f32 0.0, %v813
    %v815 = vpop.f32.mrb[0].mxu0
    %v816 = vpop.f32.mrb[0].mxu0
    %v817 = vadd.f32 0.0, %v816
    %v818 = vpop.f32.mrb[0].mxu0
    %819 = vmatprep.mubr.bf16.mxu0 0
    %820 = vmatmul.mubr.bf16.gmra.mrb[0].mxu0 %v772
    %v821 = vpop.f32.mrb[0].mxu0
    %v822 = vadd.f32 0.0, %v821
    %v823 = vpop.f32.mrb[0].mxu0
    %v824 = vpop.f32.mrb[0].mxu0
    %v825 = vadd.f32 0.0, %v824
    %v826 = vpop.f32.mrb[0].mxu0
    %827 = vmatprep.mubr.bf16.mxu0 0
    %828 = vmatmul.mubr.bf16.gmra.mrb[0].mxu0 %v773
    %v829 = vpop.f32.mrb[0].mxu0
    %v830 = vadd.f32 0.0, %v829
    %v831 = vpop.f32.mrb[0].mxu0
    %v832 = vpop.f32.mrb[0].mxu0
    %v833 = vadd.f32 0.0, %v832
    %v834 = vpop.f32.mrb[0].mxu0
    %835 = vmatprep.mubr.bf16.mxu0 0
    %836 = vmatmul.mubr.bf16.gmra.mrb[0].mxu0 %v774
    %v837 = vpop.f32.mrb[0].mxu0
    %v838 = vadd.f32 0.0, %v837
    %v839 = vpop.f32.mrb[0].mxu0
    %v840 = vpop.f32.mrb[0].mxu0
    %v841 = vadd.f32 0.0, %v840
    %v842 = vpop.f32.mrb[0].mxu0
    %843 = vmatprep.mubr.bf16.mxu0 0
    %844 = vmatmul.mubr.bf16.gmra.mrb[0].mxu0 %v775
    %v845 = vpop.f32.mrb[0].mxu0
    %v846 = vadd.f32 0.0, %v845
    %v847 = vpop.f32.mrb[0].mxu0
    %v848 = vpop.f32.mrb[0].mxu0
    %v849 = vadd.f32 0.0, %v848
    %v850 = vpop.f32.mrb[0].mxu0
    %851 = vmatprep.mubr.bf16.mxu0 0
    %852 = vmatmul.mubr.bf16.gmra.mrb[0].mxu0 %v776
    %v853 = vpop.f32.mrb[0].mxu0
    %v854 = vadd.f32 0.0, %v853
    %v855 = vpop.f32.mrb[0].mxu0
    %v856 = vpop.f32.mrb[0].mxu0
    %v857 = vadd.f32 0.0, %v856
    %v858 = vpop.f32.mrb[0].mxu0
    %859 = vmatprep.mubr.bf16.mxu0 0
    %860 = vmatmul.mubr.bf16.gmra.mrb[0].mxu0 %v777
    %v861 = vpop.f32.mrb[0].mxu0
    %v862 = vadd.f32 0.0, %v861
    %v863 = vpop.f32.mrb[0].mxu0
    %v864 = vpop.f32.mrb[0].mxu0
    %v865 = vadd.f32 0.0, %v864
    %v866 = vpop.f32.mrb[0].mxu0
    %867 = vmatprep.mubr.bf16.mxu0 0
    %868 = vmatmul.mubr.bf16.gmra.mrb[0].mxu0 %v778
    %v869 = vpop.f32.mrb[0].mxu0
    %v870 = vadd.f32 0.0, %v869
    %v871 = vpop.f32.mrb[0].mxu0
    %v872 = vpop.f32.mrb[0].mxu0
    %v873 = vadd.f32 0.0, %v872
    %v874 = vpop.f32.mrb[0].mxu0
    %875 = vdwg.mxu0
    %v876 = vmul.f32 %v814, %v454
    %v877 = vmul.f32 %v817, %v455
    %v878 = vmul.f32 %v822, %v456
    %v879 = vmul.f32 %v825, %v457
    %v880 = vmul.f32 %v830, %v458
    %v881 = vmul.f32 %v833, %v459
    %v882 = vmul.f32 %v838, %v460
    %v883 = vmul.f32 %v841, %v461
    %v884 = vmul.f32 %v846, %v462
    %v885 = vmul.f32 %v849, %v463
    %v886 = vmul.f32 %v854, %v464
    %v887 = vmul.f32 %v857, %v465
    %v888 = vmul.f32 %v862, %v466
    %v889 = vmul.f32 %v865, %v467
    %v890 = vmul.f32 %v870, %v468
    %v891 = vmul.f32 %v873, %v469
    %v892 = vadd.f32 %v876, %v880
    %v893 = vadd.f32 %v877, %v881
    %v894 = vadd.f32 %v878, %v882
    %v895 = vadd.f32 %v879, %v883
    %v896 = vadd.f32 %v892, %v884
    %v897 = vadd.f32 %v893, %v885
    %v898 = vadd.f32 %v894, %v886
    %v899 = vadd.f32 %v895, %v887
    %v900 = vadd.f32 %v896, %v888
    %v901 = vadd.f32 %v897, %v889
    %v902 = vadd.f32 %v898, %v890
    %v903 = vadd.f32 %v899, %v891
    %v904 = vpack.c.bf16 %v901, %v900
    %v905 = vpack.c.bf16 %v903, %v902
    %v906 = vld [vmem:[#allocation7] sm:$0xf]
    %v907 = vld [vmem:[#allocation7 + $0x4] sm:$0xf]
    %v908 = vld [vmem:[#allocation7 + $0x8] sm:$0xf]
    %v909 = vld [vmem:[#allocation7 + $0xc] sm:$0xf]
    %v910 = vld [vmem:[#allocation7 + $0x10] sm:$0xf]
    %v911 = vld [vmem:[#allocation7 + $0x14] sm:$0xf]
    %v912 = vld [vmem:[#allocation7 + $0x18] sm:$0xf]
    %v913 = vld [vmem:[#allocation7 + $0x1c] sm:$0xf]
    %v914 = vld [vmem:[#allocation7 + $0x20] sm:$0xf]
    %v915 = vld [vmem:[#allocation7 + $0x24] sm:$0xf]
    %v916 = vld [vmem:[#allocation7 + $0x28] sm:$0xf]
    %v917 = vld [vmem:[#allocation7 + $0x2c] sm:$0xf]
    %v918 = vld [vmem:[#allocation7 + $0x30] sm:$0xf]
    %v919 = vld [vmem:[#allocation7 + $0x34] sm:$0xf]
    %v920 = vld [vmem:[#allocation7 + $0x38] sm:$0xf]
    %v921 = vld [vmem:[#allocation7 + $0x3c] sm:$0xf]
    %v922 = vld [vmem:[%s6] sm:$0x1]
    %v924 = vlaneseq
    %v925 = vshrl.u32 %v924, 7
    %v926 = vsub.s32 0, %v925
    %v927 = vrot.slane %v922, %v926
    %v945 = vunpack.c.l.b16 %v906
    %v946 = vunpack.c.l.b16 %v907
    %v947 = vunpack.c.l.b16 %v908
    %v948 = vunpack.c.l.b16 %v909
    %v949 = vunpack.c.l.b16 %v910
    %v950 = vunpack.c.l.b16 %v911
    %v951 = vunpack.c.l.b16 %v912
    %v952 = vunpack.c.l.b16 %v913
    %v953 = vunpack.c.l.b16 %v914
    %v954 = vunpack.c.l.b16 %v915
    %v955 = vunpack.c.l.b16 %v916
    %v956 = vunpack.c.l.b16 %v917
    %v957 = vunpack.c.l.b16 %v918
    %v958 = vunpack.c.l.b16 %v919
    %v959 = vunpack.c.l.b16 %v920
    %v960 = vunpack.c.l.b16 %v921
    %v961 = vpack.c.b16 %v946, %v945
    %v962 = vpack.c.b16 %v948, %v947
    %v963 = vpack.c.b16 %v950, %v949
    %v964 = vpack.c.b16 %v952, %v951
    %v965 = vpack.c.b16 %v954, %v953
    %v966 = vpack.c.b16 %v956, %v955
    %v967 = vpack.c.b16 %v958, %v957
    %v968 = vpack.c.b16 %v960, %v959
    %977 = vmatprep.subr.bf16.mxu0 0
    %978 = vmatpush1.bf16.msra.mxu0 %v961
    %979 = vmatprep.subr.bf16.mxu0 0
    %980 = vmatpush1.bf16.msra.mxu0 %v962
    %981 = vmatprep.subr.bf16.mxu0 0
    %982 = vmatpush1.bf16.msra.mxu0 %v963
    %983 = vmatprep.subr.bf16.mxu0 0
    %984 = vmatpush1.bf16.msra.mxu0 %v964
    %985 = vmatprep.subr.bf16.mxu0 0
    %986 = vmatpush1.bf16.msra.mxu0 %v965
    %987 = vmatprep.subr.bf16.mxu0 0
    %988 = vmatpush1.bf16.msra.mxu0 %v966
    %989 = vmatprep.subr.bf16.mxu0 0
    %990 = vmatpush1.bf16.msra.mxu0 %v967
    %991 = vmatprep.subr.bf16.mxu0 0
    %992 = vmatpush1.bf16.msra.mxu0 %v968
    %993 = vmatprep.subr.bf16.mxu0 0
    %994 = vmatpush1.bf16.msra.mxu0 0
    %995 = vmatprep.subr.bf16.mxu0 0
    %996 = vmatpush1.bf16.msra.mxu0 0
    %997 = vmatprep.subr.bf16.mxu0 0
    %998 = vmatpush1.bf16.msra.mxu0 0
    %999 = vmatprep.subr.bf16.mxu0 0
    %1000 = vmatpush1.bf16.msra.mxu0 0
    %1001 = vmatprep.subr.bf16.mxu0 0
    %1002 = vmatpush1.bf16.msra.mxu0 0
    %1003 = vmatprep.subr.bf16.mxu0 0
    %1004 = vmatpush1.bf16.msra.mxu0 0
    %1005 = vmatprep.subr.bf16.mxu0 0
    %1006 = vmatpush1.bf16.msra.mxu0 0
    %1007 = vmatprep.subr.bf16.mxu0 0
    %1008 = vmatpush1.bf16.msra.mxu0 0
    %1009 = vmatprep.mubr.bf16.mxu0 0
    %1010 = vmatmul.mubr.bf16.gmra.mrb[0].mxu0 %v904
    %v1011 = vpop.f32.mrb[0].mxu0
    %v1012 = vadd.f32 %v927, %v1011
    %v1013 = vpop.f32.mrb[0].mxu0
    %v1014 = vpop.f32.mrb[0].mxu0
    %v1015 = vadd.f32 %v927, %v1014
    %v1016 = vpop.f32.mrb[0].mxu0
    %1017 = vmatprep.mubr.bf16.mxu0 0
    %1018 = vmatmul.mubr.bf16.gmra.mrb[0].mxu0 %v905
    %v1019 = vpop.f32.mrb[0].mxu0
    %v1020 = vadd.f32 %v927, %v1019
    %v1021 = vpop.f32.mrb[0].mxu0
    %v1022 = vpop.f32.mrb[0].mxu0
    %v1023 = vadd.f32 %v927, %v1022
    %v1024 = vpop.f32.mrb[0].mxu0
    %1025 = vdwg.mxu0
    %1026 = vst [vmem:[#allocation11] sm:$0xff] %v1012
    %1027 = vst [vmem:[#allocation11 + $0x8] sm:$0xff] %v1015
    %1028 = vst [vmem:[#allocation11 + $0x10] sm:$0xff] %v1020
    %1029 = vst [vmem:[#allocation11 + $0x18] sm:$0xff] %v1023
    // Predicated region
    $region58: #{tpu_custom_call.1} parent=1 // pred_check
      _
    $region59: #{tpu_custom_call.1} parent=1 // pred_check_branch
      %1031 = sbr.rel (0) target = $region61
    $region60: #{tpu_custom_call.1} parent=1 // pred_region
      %s1033 = ssub.s32 512, 512
      %1034 = vsyncadd [#allocation4], %s1033
      %s1035 = sshll.u32 [#allocation11], 4
      %s1036 = int_to_ptr.vmem [resolvable:$true] %s1035
      %1041 = dma.vmem_to_hbm [thread:$0]  %s1036, 512, %s9, [#allocation4], 128, 128, 8
    $region61: #{tpu_custom_call.1} parent=1 // pred_fallthru
      _
    // Predicated region
    $region62: #{tpu_custom_call.1} parent=1 // pred_check
      _
    $region63: #{tpu_custom_call.1} parent=1 // pred_check_branch
      %1043 = sbr.rel (0) target = $region65
    $region64: #{tpu_custom_call.1} parent=1 // pred_region
      %1044 = dma.done [#allocation4], 512
    $region65: #{tpu_custom_call.1} parent=1 // pred_fallthru
      _
    %1045 = vsyncpa [#allocation3], 1
    %1046 = vsyncpa [#allocation6], 1
    %1047 = vsyncpa [#allocation9], 1
    %1048 = vsyncpa [#allocation4], 1

</llo_original>
